<compile_context>
chip_gen: v5e
topology: v5e:2x2
jax: 0.10.0
libtpu: 0.0.40
codegen_flags: <defaults>
</compile_context>

<pallas_src>
import jax
import jax.numpy as jnp
from jax.experimental import pallas as pl
from jax.experimental.pallas import tpu as pltpu

_LANE = 128
_SUBLANE_F32 = 8
_SUBLANE_BF16 = 16


def _round_up(a, b):
    return (a + b - 1) // b * b


def _linear_kernel(x_ref, w_ref, b_ref, o_ref):
    # x_ref: [tm, K]   w_ref: [K, tn] (pre-transposed)   b_ref: [1, tn] (f32)
    # o_ref: [tm, tn]
    acc = jnp.dot(x_ref[...], w_ref[...], preferred_element_type=jnp.float32)
    o_ref[...] = (acc + b_ref[...]).astype(o_ref.dtype)


def logistic_regression_forward(x, weight, bias, input_dim, *, use_bf16=False):
    """Reproduces LogisticRegression.forward.

    x:      [batch * input_dim] flat input (PyTorch reshape convention)
    weight: [output_dim, input_dim]  (PyTorch nn.Linear convention)
    bias:   [output_dim]
    """
    if x.shape[0] % input_dim != 0:
        raise ValueError("flat input length must be a multiple of input_dim "
                         "(PyTorch reshape would fail here too)")
    batch = x.shape[0] // input_dim
    x2d = x.reshape(batch, input_dim)
    output_dim, k_dim = weight.shape
    assert k_dim == input_dim, "weight shape must be [output_dim, input_dim]"

    out_dtype = x2d.dtype
    cdt = jnp.bfloat16 if use_bf16 else x2d.dtype
    sub = _SUBLANE_BF16 if cdt == jnp.bfloat16 else _SUBLANE_F32

    # ---- Lane-dense output padding (256-aligned once it matters for the
    # 256-wide MXU N on v6e/v7x; 128 for tiny output_dim). --------------------
    n_align = _LANE if output_dim <= _LANE else 2 * _LANE
    n_pad = _round_up(output_dim, n_align)

    # ---- One-time parameter prep (hoist out of the per-call path in a real
    # model): zero-pad extra output columns, pre-transpose to [K, n_pad]. -----
    w_t = jnp.pad(weight, ((0, n_pad - output_dim), (0, 0))).T.astype(cdt)
    b_p = jnp.pad(bias, (0, n_pad - output_dim)).reshape(1, n_pad).astype(jnp.float32)

    # ---- Input: pad rows only to the sublane multiple (<= sub-1 rows). ------
    x_c = x2d.astype(cdt)
    batch_p = _round_up(batch, sub)
    if batch_p != batch:
        x_c = jnp.pad(x_c, ((0, batch_p - batch), (0, 0)))

    itemsize = jnp.dtype(cdt).itemsize
    out_itemsize = jnp.dtype(out_dtype).itemsize

    # ---- VMEM budget: count weight + bias + double buffering everywhere. ----
    budget = 40 * 1024 * 1024            # conservative: safe on v7x (64 MiB/TC)
    w_budget = budget // 3
    w_full_2x = 2 * n_pad * input_dim * itemsize
    if w_full_2x <= w_budget:
        tn = n_pad                       # weight fully resident across the grid
    else:
        tn_cap = (w_budget // (2 * input_dim * itemsize)) // n_align * n_align
        tn = max(n_align, min(n_pad, int(tn_cap)))
        # TODO(synk): add a K grid axis + f32 VMEM accumulator (pl.when
        # init/finalize) if even a single (K, n_align) weight tile overflows.

    w_tile_bytes = 2 * tn * input_dim * itemsize     # assume double-buffered
    bias_bytes = 2 * n_pad * 4
    bytes_per_row = 2 * (input_dim * itemsize + tn * out_itemsize)
    remaining = max(budget - w_tile_bytes - bias_bytes, sub * bytes_per_row)
    tm_cap = max(sub, (remaining // bytes_per_row) // sub * sub)
    tm = int(min(1024, tm_cap, batch_p))
    # Ensure >= 2 grid steps over the batch axis when possible so v7x's two
    # TensorCores both get work (harmless extra step on single-TC v5e/v6e).
    if tm >= batch_p and batch_p >= 2 * sub:
        tm = _round_up(pl.cdiv(batch_p, 2), sub)

    m_grid = pl.cdiv(batch_p, tm)        # ragged last block: Pallas masks it
    n_grid = pl.cdiv(n_pad, tn)

    vmem_est = (2 * tm * input_dim * itemsize        # x tiles (double-buffered)
                + 2 * tm * tn * out_itemsize         # out tiles
                + w_tile_bytes + bias_bytes)
    vmem_limit = int(min(max(2 * vmem_est + (2 << 20), 32 << 20), 60 << 20))

    out = pl.pallas_call(
        _linear_kernel,
        out_shape=jax.ShapeDtypeStruct((batch_p, n_pad), out_dtype),
        grid_spec=pltpu.PrefetchScalarGridSpec(
            num_scalar_prefetch=0,
            grid=(m_grid, n_grid),
            in_specs=[
                # x tiles stream over the batch axis; index constant in j so the
                # same block is re-used (not re-fetched) across the N axis.
                pl.BlockSpec((tm, input_dim), lambda i, j: (i, 0)),
                # Pre-transposed weight tiles over N (fully resident if n_grid==1).
                pl.BlockSpec((input_dim, tn), lambda i, j: (0, j)),
                pl.BlockSpec((1, tn), lambda i, j: (0, j)),
            ],
            out_specs=pl.BlockSpec((tm, tn), lambda i, j: (i, j)),
        ),
        compiler_params=pltpu.CompilerParams(
            # Both axes are independent -> shard across TensorCores on v7x.
            dimension_semantics=("parallel", "parallel"),
            vmem_limit_bytes=vmem_limit,
        ),
    )(x_c, w_t, b_p)

    # Strip the sublane row padding and the lane-padding columns.
    return out[:batch, :output_dim]


if __name__ == "__main__":
    # Small, module-consistent shapes.
    input_dim = 32
    output_dim = 8
    batch = 4

    key = jax.random.PRNGKey(0)
    kx, kw, kb = jax.random.split(key, 3)

    # PyTorch nn.Linear init: U(-1/sqrt(in), 1/sqrt(in)), reproduced deterministically.
    bound = 1.0 / (input_dim ** 0.5)
    weight = jax.random.uniform(kw, (output_dim, input_dim),
                                minval=-bound, maxval=bound, dtype=jnp.float32)
    bias = jax.random.uniform(kb, (output_dim,),
                              minval=-bound, maxval=bound, dtype=jnp.float32)

    # Input matching the PyTorch reshape convention: leading dim = batch * input_dim.
    x = jax.random.normal(kx, (batch * input_dim,), dtype=jnp.float32)

    out = logistic_regression_forward(x, weight, bias, input_dim)
    out = jax.block_until_ready(out)

    # Reference check in plain JAX. (Note: like the PyTorch module, no
    # sigmoid/softmax is applied despite the class name.)
    ref = x.reshape(batch, input_dim) @ weight.T + bias
    assert out.shape == (batch, output_dim)
    assert jnp.allclose(out, ref, atol=1e-4, rtol=1e-4)

    print("KERNEL_OK")
</pallas_src>

<mosaic_0001>
module attributes {stable_mosaic.version = 11 : i64} {
  func.func @_linear_kernel(%arg0: i32, %arg1: i32, %arg2: memref<8x32xf32, #tpu.memory_space<vmem>>, %arg3: memref<32x128xf32, #tpu.memory_space<vmem>>, %arg4: memref<1x128xf32, #tpu.memory_space<vmem>>, %arg5: memref<8x128xf32, #tpu.memory_space<vmem>>) attributes {dimension_semantics = [#tpu.dimension_semantics<parallel>, #tpu.dimension_semantics<parallel>], iteration_bounds = array<i64: 1, 1>, scalar_prefetch = 0 : i64, scratch_operands = 0 : i64, tpu.core_type = #tpu.core_type<tc>, window_params = [{transform_indices = @transform_0, window_bounds = array<i64: 8, 32>}, {transform_indices = @transform_1, window_bounds = array<i64: 32, 128>}, {transform_indices = @transform_2, window_bounds = array<i64: 1, 128>}, {transform_indices = @transform_3, window_bounds = array<i64: 8, 128>}]} {
    %c0 = arith.constant 0 : index
    %c0_0 = arith.constant 0 : index
    %0 = vector.load %arg2[%c0, %c0_0] : memref<8x32xf32, #tpu.memory_space<vmem>>, vector<8x32xf32>
    %c0_1 = arith.constant 0 : index
    %c0_2 = arith.constant 0 : index
    %1 = vector.load %arg3[%c0_1, %c0_2] : memref<32x128xf32, #tpu.memory_space<vmem>>, vector<32x128xf32>
    %cst = arith.constant dense<0.000000e+00> : vector<8x128xf32>
    %2 = tpu.matmul %0, %1, %cst {dimension_numbers = #tpu.dot_dimension_numbers<[1], [0], [0], [1], [0, 0, 1, 1], [], []>} : vector<8x32xf32>, vector<32x128xf32>, vector<8x128xf32> -> vector<8x128xf32>
    %c0_3 = arith.constant 0 : index
    %c0_4 = arith.constant 0 : index
    %3 = vector.load %arg4[%c0_3, %c0_4] : memref<1x128xf32, #tpu.memory_space<vmem>>, vector<1x128xf32>
    %4 = vector.broadcast %3 : vector<1x128xf32> to vector<8x128xf32>
    %5 = arith.addf %2, %4 : vector<8x128xf32>
    %c0_5 = arith.constant 0 : index
    %c0_6 = arith.constant 0 : index
    %6 = vector.load %arg5[%c0_5, %c0_6] : memref<8x128xf32, #tpu.memory_space<vmem>>, vector<8x128xf32>
    tpu.vector_store %arg5[%c0_5, %c0_6], %5 {strides = array<i32>} : memref<8x128xf32, #tpu.memory_space<vmem>>, vector<8x128xf32>,
    return
  }
  func.func @transform_0(%arg0: i32, %arg1: i32) -> (i32, i32) {
    %c0_i32 = arith.constant 0 : i32
    %c0_i32_0 = arith.constant 0 : i32
    return %arg0, %c0_i32 : i32, i32
  }
  func.func @transform_1(%arg0: i32, %arg1: i32) -> (i32, i32) {
    %c0_i32 = arith.constant 0 : i32
    %c0_i32_0 = arith.constant 0 : i32
    return %c0_i32, %arg1 : i32, i32
  }
  func.func @transform_2(%arg0: i32, %arg1: i32) -> (i32, i32) {
    %c0_i32 = arith.constant 0 : i32
    %c0_i32_0 = arith.constant 0 : i32
    return %c0_i32, %arg1 : i32, i32
  }
  func.func @transform_3(%arg0: i32, %arg1: i32) -> (i32, i32) {
    %c0_i32 = arith.constant 0 : i32
    return %arg0, %arg1 : i32, i32
  }
}

</mosaic_0001>

<llo_original>
// kernel: tpu_custom_call.1
$region0: #{tpu_custom_call.1}
  #allocation0 [shape = 'u32[]', space=smem, size = 0x4, offset = 0x4, fixed_abs, tag = 'smem constant byte address 0x4 - core index']
  #allocation1 [shape = 'u32[72,128]{1,0:T(1,128)}', space=vmem, size = 0x9000, scoped, tag = 'internal scratch']
  %s0 = inlined_call_operand.hbm [shape: f32[8,32], index: 0, kind: input, shape index: {}]
  %s1 = inlined_call_operand.hbm [shape: f32[32,128], index: 1, kind: input, shape index: {}]
  %s2 = inlined_call_operand.vmem [shape: f32[1,128], index: 2, kind: input, shape index: {}]
  %s3 = inlined_call_operand.hbm [shape: f32[8,128], index: 3, kind: output, shape index: {}]
  %s4 = sld [smem:[#allocation0]]
  $region30: #{tpu_custom_call.1} parent=0
    _
  %s6 = ssub.s32 1, %s4
  %s7 = scalar_select 0, %s6, %s4
  $region1: #{tpu_custom_call.1} parent=0
    #allocation2 [shape = 'u8[4096]{0}', space=vmem, size = 0x1000, scoped, tag = 'input window, operand 0, single buffered']
    #allocation3 [shape = 's32[1]{0}', space=sflag, size = 0x4, scoped, tag = 'scoped memory for tpu_custom_call.1']
    #allocation4 [shape = 's32[1]{0}', space=sflag, size = 0x4, scoped, tag = 'scoped memory for tpu_custom_call.1']
    #allocation5 [shape = 'u8[16384]{0}', space=vmem, size = 0x4000, scoped, tag = 'input window, operand 1, single buffered']
    #allocation6 [shape = 's32[1]{0}', space=sflag, size = 0x4, scoped, tag = 'scoped memory for tpu_custom_call.1']
    #allocation7 [shape = 'u8[4096]{0}', space=vmem, size = 0x1000, scoped, tag = 'output window, operand 0, single buffered']
    %8 = vsyncpa [#allocation3], 0
    %9 = vsyncpa [#allocation6], 0
    %10 = vsyncpa [#allocation4], 0
    // Predicated region
    $region2: #{tpu_custom_call.1} parent=1 // pred_check
      _
    $region3: #{tpu_custom_call.1} parent=1 // pred_check_branch
      %12 = sbr.rel (0) target = $region5
    $region4: #{tpu_custom_call.1} parent=1 // pred_region
      %14 = vsyncadd [#allocation3], 0
      %s16 = sshll.u32 %s0, 4
      %s17 = int_to_ptr.hbm [resolvable:$true] %s16
      %s18 = sshll.u32 [#allocation2], 4
      %s19 = int_to_ptr.vmem [resolvable:$true] %s18
      %21 = dma.hbm_to_vmem [thread:$0]  %s17, 128, %s19, [#allocation3]
    $region5: #{tpu_custom_call.1} parent=1 // pred_fallthru
      _
    // Predicated region
    $region6: #{tpu_custom_call.1} parent=1 // pred_check
      _
    $region7: #{tpu_custom_call.1} parent=1 // pred_check_branch
      %23 = sbr.rel (0) target = $region9
    $region8: #{tpu_custom_call.1} parent=1 // pred_region
      %25 = vsyncadd [#allocation6], 0
      %s26 = sshll.u32 %s1, 4
      %s27 = int_to_ptr.hbm [resolvable:$true] %s26
      %s28 = sshll.u32 [#allocation5], 4
      %s29 = int_to_ptr.vmem [resolvable:$true] %s28
      %34 = dma.hbm_to_vmem [thread:$0]  %s27, 512, %s29, [#allocation6], 128, 128, 8
    $region9: #{tpu_custom_call.1} parent=1 // pred_fallthru
      _
    // Predicated region
    $region10: #{tpu_custom_call.1} parent=1 // pred_check
      _
    $region11: #{tpu_custom_call.1} parent=1 // pred_check_branch
      %36 = sbr.rel (0) target = $region13
    $region12: #{tpu_custom_call.1} parent=1 // pred_region
      _
    $region13: #{tpu_custom_call.1} parent=1 // pred_fallthru
      _
    // Predicated region
    $region14: #{tpu_custom_call.1} parent=1 // pred_check
      _
    $region15: #{tpu_custom_call.1} parent=1 // pred_check_branch
      %38 = sbr.rel (0) target = $region17
    $region16: #{tpu_custom_call.1} parent=1 // pred_region
      %40 = dma.done [#allocation3], 128
    $region17: #{tpu_custom_call.1} parent=1 // pred_fallthru
      _
    // Predicated region
    $region18: #{tpu_custom_call.1} parent=1 // pred_check
      _
    $region19: #{tpu_custom_call.1} parent=1 // pred_check_branch
      %42 = sbr.rel (0) target = $region21
    $region20: #{tpu_custom_call.1} parent=1 // pred_region
      %44 = dma.done [#allocation6], 512
    $region21: #{tpu_custom_call.1} parent=1 // pred_fallthru
      _
    %v45 = vld [vmem:[#allocation2] sm:$0xff]
    %v46 = vld [vmem:[#allocation5] sm:$0xff]
    %v47 = vld [vmem:[#allocation5 + $0x8] sm:$0xff]
    %v48 = vld [vmem:[#allocation5 + $0x10] sm:$0xff]
    %v49 = vld [vmem:[#allocation5 + $0x18] sm:$0xff]
    %v50 = vld [vmem:[%s2] sm:$0x1]
    %v52 = vperm.slane %v50, 0
    %vm54 = vcmask 261120
    %v56 = vsel %vm54, %v45, 0
    %58 = vmatpush.msra.mxu0 0.0
    %59 = vmatpush.msra.mxu0 0.0
    %60 = vmatpush.msra.mxu0 0.0
    %61 = vmatpush.msra.mxu0 0.0
    %62 = vmatpush.msra.mxu0 0.0
    %63 = vmatpush.msra.mxu0 0.0
    %64 = vmatpush.msra.mxu0 0.0
    %65 = vmatpush.msra.mxu0 0.0
    %66 = vmatpush.msra.mxu0 0.0
    %67 = vmatpush.msra.mxu0 0.0
    %68 = vmatpush.msra.mxu0 0.0
    %69 = vmatpush.msra.mxu0 0.0
    %70 = vmatpush.msra.mxu0 %v49
    %71 = vmatpush.msra.mxu0 %v48
    %72 = vmatpush.msra.mxu0 %v47
    %73 = vmatpush.msra.mxu0 %v46
    %74 = vmatmul.f32.gmra.mxu0 %v56
    %v75 = vpop.f32.mrf.mxu0
    %v76 = vadd.f32 %v52, %v75
    %77 = vdwg.mxu0
    %78 = vst [vmem:[#allocation7] sm:$0xff] %v76
    // Predicated region
    $region22: #{tpu_custom_call.1} parent=1 // pred_check
      _
    $region23: #{tpu_custom_call.1} parent=1 // pred_check_branch
      %80 = sbr.rel (0) target = $region25
    $region24: #{tpu_custom_call.1} parent=1 // pred_region
      %82 = vsyncadd [#allocation4], 0
      %s84 = sshll.u32 [#allocation7], 4
      %s85 = int_to_ptr.vmem [resolvable:$true] %s84
      %s86 = sshll.u32 %s3, 4
      %s87 = int_to_ptr.hbm [resolvable:$true] %s86
      %89 = dma.vmem_to_hbm [thread:$0]  %s85, 128, %s87, [#allocation4]
    $region25: #{tpu_custom_call.1} parent=1 // pred_fallthru
      _
    // Predicated region
    $region26: #{tpu_custom_call.1} parent=1 // pred_check
      _
    $region27: #{tpu_custom_call.1} parent=1 // pred_check_branch
      %91 = sbr.rel (0) target = $region29
    $region28: #{tpu_custom_call.1} parent=1 // pred_region
      %93 = dma.done [#allocation4], 128
    $region29: #{tpu_custom_call.1} parent=1 // pred_fallthru
      _
    %94 = vsyncpa [#allocation3], 1
    %95 = vsyncpa [#allocation6], 1
    %96 = vsyncpa [#allocation4], 1

</llo_original>
